<compile_context>
chip_gen: v7x
topology: tpu7x:2x2x1
jax: 0.10.0
libtpu: 0.0.40
codegen_flags: <defaults>
</compile_context>

<pallas_src>
import math
import functools

import jax
import jax.numpy as jnp
from jax.experimental import pallas as pl
from jax.experimental.pallas import tpu as pltpu


def _round_up(x, m):
    return (x + m - 1) // m * m


def _pick_head_group(heads, d_k):
    """Largest divisor of `heads` whose group width G*d_k targets ~256 lanes
    (fills the 256-wide v6e/v7x MXU; harmless on v5e)."""
    g = max(1, min(heads, 256 // max(d_k, 1)))
    while heads % g:
        g -= 1
    return g


def _vmem_limit(block_bytes, scratch_bytes=0):
    est = 2 * block_bytes + scratch_bytes + (2 << 20)   # double-buffered blocks
    return int(min(100 * (1 << 20), max(32 * (1 << 20), est)))


# ---------------------------------------------------------------------------
# Stage 1: linear projection kernel  y = x @ W + b   (grid: batch x seq tiles)
# ---------------------------------------------------------------------------
def _proj_kernel(x_ref, w_ref, b_ref, out_ref):
    y = jnp.dot(x_ref[0], w_ref[...], preferred_element_type=jnp.float32)
    out_ref[0] = (y + b_ref[...]).astype(out_ref.dtype)


def _project(x, w, b, ts):
    """x:(bs,s,d_in) @ w:(d_in,d_out) + b -> (bs, round_up(s,ts), d_out) bf16."""
    bs, s, d_in = x.shape
    d_out = w.shape[1]
    s_pad = _round_up(s, ts)
    if s_pad != s:
        x = jnp.pad(x, ((0, 0), (0, s_pad - s), (0, 0)))
    blk = ts * d_in * 2 + d_in * d_out * 2 + d_out * 4 + ts * d_out * 2
    return pl.pallas_call(
        _proj_kernel,
        out_shape=jax.ShapeDtypeStruct((bs, s_pad, d_out), jnp.bfloat16),
        grid=(bs, s_pad // ts),
        in_specs=[pl.BlockSpec((1, ts, d_in), lambda b, i: (b, i, 0)),
                  pl.BlockSpec((d_in, d_out), lambda b, i: (0, 0)),
                  pl.BlockSpec((1, d_out), lambda b, i: (0, 0))],
        out_specs=pl.BlockSpec((1, ts, d_out), lambda b, i: (b, i, 0)),
        compiler_params=pltpu.CompilerParams(
            dimension_semantics=("parallel", "parallel"),
            vmem_limit_bytes=_vmem_limit(blk)),
    )(x.astype(jnp.bfloat16), w.astype(jnp.bfloat16),
      b.reshape(1, d_out).astype(jnp.float32))


# ---------------------------------------------------------------------------
# Stage 2: attention + accumulated output projection
#   grid = (batch, q-tiles, head-groups); head-group axis is the reduction.
# ---------------------------------------------------------------------------
def _attn_body(q_ref, k_ref, v_ref, m_ref, wo_ref, bo_ref, out_ref, acc_ref,
               *, use_mask):
    hg = pl.program_id(2)

    @pl.when(hg == 0)
    def _():
        acc_ref[...] = jnp.zeros_like(acc_ref)

    qh = q_ref[0]                       # (G, tq,    d_k) bf16, pre-scaled by 1/sqrt(d_k)
    kh = k_ref[0]                       # (G, seq_k, d_k) bf16
    vh = v_ref[0]                       # (G, seq_k, d_k) bf16

    # scores = q @ k^T per head (batched over the head group, f32 accumulate)
    scores = jnp.einsum('gqd,gkd->gqk', qh, kh,
                        preferred_element_type=jnp.float32)

    if use_mask:
        keep = m_ref[0] != 0                               # int8 compare, no cast
        scores = jnp.where(keep[None, :, :], scores, -1000000000.0)
        scores = scores - jnp.max(scores, axis=-1, keepdims=True)
        e = jnp.exp(scores)
        l = jnp.sum(e, axis=-1, keepdims=True)             # (G, tq, 1)
        ctx = jnp.einsum('gqk,gkd->gqd', e.astype(jnp.bfloat16), vh,
                         preferred_element_type=jnp.float32)
        # Deferred, exact softmax normalisation on the small (G, tq, d_k) ctx.
        # Fully-masked rows -> uniform attention (matches torch softmax(-1e9)).
        ctx = ctx / l
    else:
        # Reference quirk: NO softmax when mask is None (raw scaled scores).
        ctx = jnp.einsum('gqk,gkd->gqd', scores.astype(jnp.bfloat16), vh,
                         preferred_element_type=jnp.float32)

    # Fold this head group through its Wo slice (no concat); accumulate in f32.
    fold = acc_ref[...]
    for g in range(ctx.shape[0]):        # static, small (head-group size)
        fold = fold + jnp.dot(ctx[g].astype(jnp.bfloat16), wo_ref[0, g],
                              preferred_element_type=jnp.float32)
    acc_ref[...] = fold

    @pl.when(hg == pl.num_programs(2) - 1)
    def _():
        out_ref[0] = (acc_ref[...] + bo_ref[...]).astype(out_ref.dtype)
    # TODO(synk): for very long seq_k add a flash-style seq_k grid axis with
    #             running m/l stats to bound the (G, tq, seq_k) f32 slab.


def multi_head_attention(q, k, v, params, mask=None, *, heads, block_q=128):
    """Wrapper: one-time weight transforms + layout plumbing, then two
    pallas_calls (projection, attention/output-fold)."""
    bs, seq_q, d_model = q.shape
    seq_k = k.shape[1]
    assert d_model % heads == 0
    d_k = d_model // heads
    out_dtype = q.dtype
    wq, bq, wk, bk, wv, bv, wo, bo = params

    # Fold 1/sqrt(d_k) into the Q projection (one-time weight transform).
    scale = 1.0 / math.sqrt(d_k)
    wq_s, bq_s = wq * scale, bq * scale

    # q-tile size; pad seq_q instead of silently using one whole-sequence tile.
    tq = min(block_q, _round_up(seq_q, 8))
    seq_qp = _round_up(seq_q, tq)
    n_q = seq_qp // tq
    tk = min(block_q, _round_up(seq_k, 8))

    # ---- Stage 1: Q/K/V projections (done once; stacked for self-attn) ----
    if q is k and k is v:
        w_stack = jnp.concatenate([wq_s, wk, wv], axis=1)
        b_stack = jnp.concatenate([bq_s.reshape(1, -1), bk.reshape(1, -1),
                                   bv.reshape(1, -1)], axis=1)
        y = _project(q, w_stack, b_stack, tq)            # (bs, seq_qp, 3*d_model)
        yq = y[..., :d_model]
        yk = y[:, :seq_k, d_model:2 * d_model]
        yv = y[:, :seq_k, 2 * d_model:]
    else:
        yq = _project(q, wq_s, bq_s, tq)                 # (bs, seq_qp, d_model)
        yk = _project(k, wk, bk, tk)[:, :seq_k]          # (bs, seq_k,  d_model)
        yv = _project(v, wv, bv, tk)[:, :seq_k]

    # Head-major layout plumbing (XLA copies, not kernel compute).
    G = _pick_head_group(heads, d_k)
    n_hg = heads // G

    def head_major(y):   # (bs, s, d_model) -> (bs, heads, s, d_k)
        b, s, _ = y.shape
        return y.reshape(b, s, heads, d_k).transpose(0, 2, 1, 3)

    qh = head_major(yq)          # (bs, heads, seq_qp, d_k)
    kh = head_major(yk)          # (bs, heads, seq_k,  d_k)
    vh = head_major(yv)

    wo_h = (wo.astype(jnp.bfloat16)
              .reshape(heads, d_k, d_model)
              .reshape(n_hg, G, d_k, d_model))
    bo_f = bo.reshape(1, d_model).astype(jnp.float32)

    # ---- Stage 2: attention + accumulated output projection ----
    q_spec = pl.BlockSpec((1, G, tq, d_k), lambda b, i, hg: (b, hg, i, 0))
    kv_spec = pl.BlockSpec((1, G, seq_k, d_k), lambda b, i, hg: (b, hg, 0, 0))
    wo_spec = pl.BlockSpec((1, G, d_k, d_model), lambda b, i, hg: (hg, 0, 0, 0))
    bo_spec = pl.BlockSpec((1, d_model), lambda b, i, hg: (0, 0))
    out_spec = pl.BlockSpec((1, tq, d_model), lambda b, i, hg: (b, i, 0))

    itemsize = jnp.dtype(out_dtype).itemsize
    blk = (G * tq * d_k * 2 + 2 * G * seq_k * d_k * 2
           + G * d_k * d_model * 2 + d_model * 4 + tq * d_model * itemsize)
    scratch_bytes = tq * d_model * 4

    if mask is not None:
        mask_i8 = (jnp.broadcast_to(mask, (bs, seq_q, seq_k)) != 0).astype(jnp.int8)
        if seq_qp != seq_q:  # padded q rows stay unmasked; their outputs are sliced off
            mask_i8 = jnp.pad(mask_i8, ((0, 0), (0, seq_qp - seq_q), (0, 0)),
                              constant_values=1)
        kernel = functools.partial(_attn_body, use_mask=True)
        m_spec = pl.BlockSpec((1, tq, seq_k), lambda b, i, hg: (b, i, 0))
        in_specs = [q_spec, kv_spec, kv_spec, m_spec, wo_spec, bo_spec]
        args = (qh, kh, vh, mask_i8, wo_h, bo_f)
        blk += tq * seq_k
    else:
        # Separate variant with NO mask input at all (zero dummy-mask traffic).
        def kernel(q_ref, k_ref, v_ref, wo_ref, bo_ref, out_ref, acc_ref):
            _attn_body(q_ref, k_ref, v_ref, None, wo_ref, bo_ref, out_ref,
                       acc_ref, use_mask=False)
        in_specs = [q_spec, kv_spec, kv_spec, wo_spec, bo_spec]
        args = (qh, kh, vh, wo_h, bo_f)

    out = pl.pallas_call(
        kernel,
        out_shape=jax.ShapeDtypeStruct((bs, seq_qp, d_model), out_dtype),
        grid=(bs, n_q, n_hg),
        in_specs=in_specs,
        out_specs=out_spec,
        scratch_shapes=[pltpu.VMEM((tq, d_model), jnp.float32)],
        compiler_params=pltpu.CompilerParams(
            dimension_semantics=("parallel", "parallel", "arbitrary"),
            vmem_limit_bytes=_vmem_limit(blk, scratch_bytes)),
    )(*args)
    return out[:, :seq_q] if seq_qp != seq_q else out


def reference_mha(q, k, v, params, mask, heads):
    """Pure-JAX reference mirroring the PyTorch forward, with the same
    mixed-precision scheme as the kernel (bf16 MXU operands, f32 accum)."""
    bs, sq, d_model = q.shape
    d_k = d_model // heads
    wq, bq, wk, bk, wv, bv, wo, bo = params
    bf16, f32 = jnp.bfloat16, jnp.float32

    def lin(x, w, b):
        return jnp.dot(x.astype(bf16), w.astype(bf16),
                       preferred_element_type=f32) + b

    qp = lin(q, wq, bq).reshape(bs, sq, heads, d_k).transpose(0, 2, 1, 3)
    kp = lin(k, wk, bk).reshape(bs, -1, heads, d_k).transpose(0, 2, 1, 3)
    vp = lin(v, wv, bv).reshape(bs, -1, heads, d_k).transpose(0, 2, 1, 3)

    scores = jnp.einsum('bhqd,bhkd->bhqk', qp.astype(bf16), kp.astype(bf16),
                        preferred_element_type=f32) / math.sqrt(d_k)
    if mask is not None:
        m = mask[:, None, :, :]
        scores = jnp.where(m == 0, -1000000000.0, scores)
        scores = jax.nn.softmax(scores, axis=-1)
    out = jnp.einsum('bhqk,bhkd->bhqd', scores.astype(bf16), vp.astype(bf16),
                     preferred_element_type=f32)
    concat = out.transpose(0, 2, 1, 3).reshape(bs, sq, d_model)
    return jnp.dot(concat.astype(bf16), wo.astype(bf16),
                   preferred_element_type=f32) + bo


if __name__ == "__main__":
    bs, seq, d_model, heads = 2, 8, 32, 4

    key = jax.random.PRNGKey(0)
    keys = jax.random.split(key, 12)
    s = 0.1
    wq = s * jax.random.normal(keys[0], (d_model, d_model), jnp.float32)
    bq = s * jax.random.normal(keys[1], (1, d_model), jnp.float32)
    wk = s * jax.random.normal(keys[2], (d_model, d_model), jnp.float32)
    bk = s * jax.random.normal(keys[3], (1, d_model), jnp.float32)
    wv = s * jax.random.normal(keys[4], (d_model, d_model), jnp.float32)
    bv = s * jax.random.normal(keys[5], (1, d_model), jnp.float32)
    wo = s * jax.random.normal(keys[6], (d_model, d_model), jnp.float32)
    bo = s * jax.random.normal(keys[7], (1, d_model), jnp.float32)
    params = (wq, bq, wk, bk, wv, bv, wo, bo)

    q = jax.random.normal(keys[8], (bs, seq, d_model), jnp.float32)
    k = jax.random.normal(keys[9], (bs, seq, d_model), jnp.float32)
    v = jax.random.normal(keys[10], (bs, seq, d_model), jnp.float32)
    # causal mask, shape (bs, seq_q, seq_k); mask==0 positions are blocked
    causal = jnp.tril(jnp.ones((seq, seq), jnp.float32))
    mask = jnp.broadcast_to(causal, (bs, seq, seq))

    # Path 1: cross-attention with mask (masked_fill + softmax, as in reference)
    out_masked = jax.block_until_ready(
        multi_head_attention(q, k, v, params, mask=mask, heads=heads))
    ref_masked = reference_mha(q, k, v, params, mask, heads)

    # Path 2: mask=None (reference quirk: raw scaled scores, NO softmax)
    out_nomask = jax.block_until_ready(
        multi_head_attention(q, k, v, params, mask=None, heads=heads))
    ref_nomask = reference_mha(q, k, v, params, None, heads)

    # Path 3: self-attention fast path (stacked QKV projection)
    out_self = jax.block_until_ready(
        multi_head_attention(q, q, q, params, mask=mask, heads=heads))
    ref_self = reference_mha(q, q, q, params, mask, heads)

    assert out_masked.shape == (bs, seq, d_model)
    assert out_nomask.shape == (bs, seq, d_model)
    assert out_self.shape == (bs, seq, d_model)
    # bf16 MXU operands -> relaxed tolerances
    assert jnp.allclose(out_masked, ref_masked, rtol=2e-2, atol=2e-2), \
        "masked path mismatch"
    assert jnp.allclose(out_nomask, ref_nomask, rtol=2e-2, atol=2e-2), \
        "no-mask path mismatch"
    assert jnp.allclose(out_self, ref_self, rtol=2e-2, atol=2e-2), \
        "self-attention path mismatch"

    print("KERNEL_OK")
</pallas_src>

<mosaic_0001>
module attributes {stable_mosaic.version = 11 : i64} {
  func.func @_proj_kernel(%arg0: i32, %arg1: i32, %arg2: memref<1x8x32xbf16, #tpu.memory_space<vmem>>, %arg3: memref<32x32xbf16, #tpu.memory_space<vmem>>, %arg4: memref<1x32xf32, #tpu.memory_space<vmem>>, %arg5: memref<1x8x32xbf16, #tpu.memory_space<vmem>>) attributes {dimension_semantics = [#tpu.dimension_semantics<parallel>, #tpu.dimension_semantics<parallel>], iteration_bounds = array<i64: 2, 1>, scalar_prefetch = 0 : i64, scratch_operands = 0 : i64, tpu.core_type = #tpu.core_type<tc>, window_params = [{transform_indices = @transform_0, window_bounds = array<i64: 1, 8, 32>}, {pipeline_mode = #tpu.pipeline_mode<synchronous>, transform_indices = @transform_1, window_bounds = array<i64: 32, 32>}, {pipeline_mode = #tpu.pipeline_mode<synchronous>, transform_indices = @transform_2, window_bounds = array<i64: 1, 32>}, {transform_indices = @transform_3, window_bounds = array<i64: 1, 8, 32>}]} {
    %c0 = arith.constant 0 : index
    %c0_0 = arith.constant 0 : index
    %c0_1 = arith.constant 0 : index
    %0 = vector.load %arg2[%c0, %c0_0, %c0_1] : memref<1x8x32xbf16, #tpu.memory_space<vmem>>, vector<1x8x32xbf16>
    %1 = vector.shape_cast %0 : vector<1x8x32xbf16> to vector<8x32xbf16>
    %c0_2 = arith.constant 0 : index
    %c0_3 = arith.constant 0 : index
    %2 = vector.load %arg3[%c0_2, %c0_3] : memref<32x32xbf16, #tpu.memory_space<vmem>>, vector<32x32xbf16>
    %cst = arith.constant dense<0.000000e+00> : vector<8x32xf32>
    %3 = tpu.matmul %1, %2, %cst {dimension_numbers = #tpu.dot_dimension_numbers<[1], [0], [0], [1], [0, 0, 1, 1], [], []>} : vector<8x32xbf16>, vector<32x32xbf16>, vector<8x32xf32> -> vector<8x32xf32>
    %c0_4 = arith.constant 0 : index
    %c0_5 = arith.constant 0 : index
    %4 = vector.load %arg4[%c0_4, %c0_5] : memref<1x32xf32, #tpu.memory_space<vmem>>, vector<1x32xf32>
    %5 = vector.broadcast %4 : vector<1x32xf32> to vector<8x32xf32>
    %6 = arith.addf %3, %5 : vector<8x32xf32>
    %7 = arith.truncf %6 : vector<8x32xf32> to vector<8x32xbf16>
    %c0_6 = arith.constant 0 : index
    %c0_7 = arith.constant 0 : index
    %c0_8 = arith.constant 0 : index
    %8 = vector.load %arg5[%c0_6, %c0_7, %c0_8] : memref<1x8x32xbf16, #tpu.memory_space<vmem>>, vector<1x8x32xbf16>
    %9 = vector.shape_cast %8 : vector<1x8x32xbf16> to vector<8x32xbf16>
    %10 = vector.shape_cast %7 : vector<8x32xbf16> to vector<1x8x32xbf16>
    tpu.vector_store %arg5[%c0_6, %c0_7, %c0_8], %10 {strides = array<i32>} : memref<1x8x32xbf16, #tpu.memory_space<vmem>>, vector<1x8x32xbf16>,
    return
  }
  func.func @transform_0(%arg0: i32, %arg1: i32) -> (i32, i32, i32) {
    %c0_i32 = arith.constant 0 : i32
    %c0_i32_0 = arith.constant 0 : i32
    return %arg0, %arg1, %c0_i32 : i32, i32, i32
  }
  func.func @transform_1(%arg0: i32, %arg1: i32) -> (i32, i32) {
    %c0_i32 = arith.constant 0 : i32
    %c0_i32_0 = arith.constant 0 : i32
    %c0_i32_1 = arith.constant 0 : i32
    return %c0_i32, %c0_i32_0 : i32, i32
  }
  func.func @transform_2(%arg0: i32, %arg1: i32) -> (i32, i32) {
    %c0_i32 = arith.constant 0 : i32
    %c0_i32_0 = arith.constant 0 : i32
    %c0_i32_1 = arith.constant 0 : i32
    return %c0_i32, %c0_i32_0 : i32, i32
  }
  func.func @transform_3(%arg0: i32, %arg1: i32) -> (i32, i32, i32) {
    %c0_i32 = arith.constant 0 : i32
    %c0_i32_0 = arith.constant 0 : i32
    return %arg0, %arg1, %c0_i32 : i32, i32, i32
  }
}

</mosaic_0001>

<llo_original>
// kernel: tpu_custom_call.1
$region0: #{tpu_custom_call.1}
  #allocation0 [shape = 'u32[]', space=smem, size = 0x4, offset = 0x4, fixed_abs, tag = 'smem constant byte address 0x4 - core index']
  #allocation1 [shape = 'u32[144,128]{1,0:T(1,128)}', space=vmem, size = 0x12000, scoped, tag = 'internal scratch']
  %s0 = inlined_call_operand.hbm [shape: bf16[2,8,32], index: 0, kind: input, shape index: {}]
  %s1 = inlined_call_operand.hbm [shape: bf16[32,32], index: 1, kind: input, shape index: {}]
  %s2 = inlined_call_operand.vmem [shape: f32[1,32], index: 2, kind: input, shape index: {}]
  %s3 = inlined_call_operand.hbm [shape: bf16[2,8,32], index: 3, kind: output, shape index: {}]
  %s4 = sld [smem:[#allocation0]]
  $region53: #{tpu_custom_call.1} parent=0
    _
  %s6 = ssub.s32 1, %s4
  %s7 = scalar_select 0, %s6, %s4
  $region1: #{tpu_custom_call.1} parent=0
    #allocation2 [shape = 'u8[4096]{0}', space=vmem, size = 0x1000, scoped, tag = 'input window, operand 0']
    #allocation3 [shape = 's32[2]{0}', space=sflag, size = 0x8, scoped, tag = 'scoped memory for tpu_custom_call.1']
    #allocation4 [shape = 's32[2]{0}', space=sflag, size = 0x8, scoped, tag = 'scoped memory for tpu_custom_call.1']
    #allocation5 [shape = 'u8[8192]{0}', space=vmem, size = 0x2000, scoped, tag = 'input window, operand 1, single buffered']
    #allocation6 [shape = 's32[1]{0}', space=sflag, size = 0x4, scoped, tag = 'scoped memory for tpu_custom_call.1']
    #allocation7 [shape = 'u8[4096]{0}', space=vmem, size = 0x1000, scoped, tag = 'output window, operand 0']
    %8 = vsyncpa [#allocation3], 0
    %s9 = scalar_lea.sflag [#allocation3], 1
    %10 = vsyncpa %s9, 0
    %11 = vsyncpa [#allocation6], 0
    %12 = vsyncpa [#allocation4], 0
    %s13 = scalar_lea.sflag [#allocation4], 1
    %14 = vsyncpa %s13, 0
    loop: start=0, step=1, limit=4
    $region2: #{tpu_custom_call.1} parent=1 // loop_pre_header
      _
    $region3: #{tpu_custom_call.1} parent=1 // loop_header
      %s16 = sphi 0, %s20
      %p17 = scmp.ge.s32.totalorder %s16, 4
      %s23 = sphi 0, %s35
      %s24 = sphi 0, %s31
      %s25 = sphi 0, %s23
      %s26 = sphi 0, %s24
      %s27 = sphi 0, %s25
      %s28 = sphi 0, %s26
      %s40 = sphi 0, %s42
      %s43 = sphi 0, %s40
      %s44 = sphi 0, %s43
      %s60 = sphi 0, %s44
      %s64 = sphi 0, %s64
      %s66 = sphi 0, %s64
      %s67 = sphi 0, %s66
      %s81 = sphi 0, %s67
      %s85 = sphi 0, %s85
      %s87 = sphi 0, %s85
      %s88 = sphi 0, %s87
      %s102 = sphi 0, %s88
      %s110 = sphi 0, %s112
      %s113 = sphi 0, %s110
      %s114 = sphi 0, %s113
      %s130 = sphi 0, %s114
    $region4: #{tpu_custom_call.1} parent=1 // loop_header_branch
      %19 = sbr.rel (%p17) target = $region8
    $region5: #{tpu_custom_call.1} parent=1 // loop_body
      %s21 = ssub.s32 %s16, 1
      %s22 = ssub.s32 %s16, 2
      %s29 = sadd.s32 1, %s24
      %p30 = scmp.ge.s32.totalorder %s29, 1
      %s31 = scalar_select %p30, 0, %s29
      %s32 = sadd.s32 1, %s23
      %s33 = scalar_select %p30, %s32, %s23
      %p34 = scmp.ge.s32.totalorder %s33, 2
      %s35 = scalar_select %p34, 0, %s33
      %s36 = ssub.s32 %s23, %s35
      %s37 = ssub.s32 %s24, %s31
      %s38 = sor.u32 %s36, %s37
      %p39 = scmp.eq.s32.totalorder %s38, 0
      %s41 = sadd.s32 %s40, 1
      %s42 = scalar_select %p39, %s40, %s41
      %p45 = pneg %p39
      %p46 = scmp.eq.s32.totalorder %s16, 1
      %p47 = por %p45, %p46
      %p48 = scmp.ne.s32.totalorder %s40, %s43
      %p49 = scmp.eq.s32.totalorder %s16, 0
      %p50 = por %p48, %p49
      %p51 = scmp.ne.s32.totalorder %s40, %s43
      %p52 = scmp.eq.s32.totalorder %s21, 1
      %p53 = por %p51, %p52
      %p54 = scmp.ne.s32.totalorder %s43, %s44
      %p55 = scmp.eq.s32.totalorder %s21, 0
      %p56 = por %p54, %p55
      %p57 = scmp.ne.s32.totalorder %s43, %s44
      %p58 = scmp.eq.s32.totalorder %s22, 1
      %p59 = por %p57, %p58
      %p61 = scmp.ne.s32.totalorder %s44, %s60
      %p62 = scmp.eq.s32.totalorder %s22, 0
      %p63 = por %p61, %p62
      %s65 = sadd.s32 %s64, 1
      %p68 = scmp.eq.s32.totalorder %s16, 1
      %p69 = scmp.ne.s32.totalorder %s64, %s66
      %p70 = scmp.eq.s32.totalorder %s16, 0
      %p71 = por %p69, %p70
      %p72 = scmp.ne.s32.totalorder %s64, %s66
      %p73 = scmp.eq.s32.totalorder %s21, 1
      %p74 = por %p72, %p73
      %p75 = scmp.ne.s32.totalorder %s66, %s67
      %p76 = scmp.eq.s32.totalorder %s21, 0
      %p77 = por %p75, %p76
      %p78 = scmp.ne.s32.totalorder %s66, %s67
      %p79 = scmp.eq.s32.totalorder %s22, 1
      %p80 = por %p78, %p79
      %p82 = scmp.ne.s32.totalorder %s67, %s81
      %p83 = scmp.eq.s32.totalorder %s22, 0
      %p84 = por %p82, %p83
      %s86 = sadd.s32 %s85, 1
      %p89 = scmp.eq.s32.totalorder %s16, 1
      %p90 = scmp.ne.s32.totalorder %s85, %s87
      %p91 = scmp.eq.s32.totalorder %s16, 0
      %p92 = por %p90, %p91
      %p93 = scmp.ne.s32.totalorder %s85, %s87
      %p94 = scmp.eq.s32.totalorder %s21, 1
      %p95 = por %p93, %p94
      %p96 = scmp.ne.s32.totalorder %s87, %s88
      %p97 = scmp.eq.s32.totalorder %s21, 0
      %p98 = por %p96, %p97
      %p99 = scmp.ne.s32.totalorder %s87, %s88
      %p100 = scmp.eq.s32.totalorder %s22, 1
      %p101 = por %p99, %p100
      %p103 = scmp.ne.s32.totalorder %s88, %s102
      %p104 = scmp.eq.s32.totalorder %s22, 0
      %p105 = por %p103, %p104
      %s106 = ssub.s32 %s23, %s35
      %s107 = ssub.s32 %s24, %s31
      %s108 = sor.u32 %s106, %s107
      %p109 = scmp.eq.s32.totalorder %s108, 0
      %s111 = sadd.s32 %s110, 1
      %s112 = scalar_select %p109, %s110, %s111
      %p115 = pneg %p109
      %p116 = scmp.eq.s32.totalorder %s16, 1
      %p117 = por %p115, %p116
      %p118 = scmp.ne.s32.totalorder %s110, %s113
      %p119 = scmp.eq.s32.totalorder %s16, 0
      %p120 = por %p118, %p119
      %p121 = scmp.ne.s32.totalorder %s110, %s113
      %p122 = scmp.eq.s32.totalorder %s21, 1
      %p123 = por %p121, %p122
      %p124 = scmp.ne.s32.totalorder %s113, %s114
      %p125 = scmp.eq.s32.totalorder %s21, 0
      %p126 = por %p124, %p125
      %p127 = scmp.ne.s32.totalorder %s113, %s114
      %p128 = scmp.eq.s32.totalorder %s22, 1
      %p129 = por %p127, %p128
      %p131 = scmp.ne.s32.totalorder %s114, %s130
      %p132 = scmp.eq.s32.totalorder %s22, 0
      %p133 = por %p131, %p132
      %p134 = scmp.le.s32.totalorder 1, %s16
      %p135 = scmp.lt.s32.totalorder %s16, 3
      %p136 = pnand %p134, %p135
      %p137 = pneg %p136
      // Predicated region
      $region9: #{tpu_custom_call.1} parent=5 // pred_check
        _
      $region10: #{tpu_custom_call.1} parent=5 // pred_check_branch
        %139 = sbr.rel (%p136) target = $region12
      $region11: #{tpu_custom_call.1} parent=5 // pred_region
        %s140 = ssub.s32 %s16, 1
        // Predicated region
        $region13: #{tpu_custom_call.1} parent=11 // pred_check
          %p141 = pneg %p77
        $region14: #{tpu_custom_call.1} parent=11 // pred_check_branch
          %143 = sbr.rel (%p141) target = $region16
        $region15: #{tpu_custom_call.1} parent=11 // pred_region
          %s145 = ssub.s32 256, 256
          %146 = vsyncadd [#allocation6], %s145
          %s147 = sshll.u32 [#allocation5], 4
          %s148 = int_to_ptr.vmem [resolvable:$true] %s147
          %153 = dma.hbm_to_vmem [thread:$0]  %s1, 256, %s148, [#allocation6], 64, 64, 4
        $region16: #{tpu_custom_call.1} parent=11 // pred_fallthru
          _
        // Predicated region
        $region17: #{tpu_custom_call.1} parent=11 // pred_check
          %p154 = pneg %p98
        $region18: #{tpu_custom_call.1} parent=11 // pred_check_branch
          %156 = sbr.rel (%p154) target = $region20
        $region19: #{tpu_custom_call.1} parent=11 // pred_region
          _
        $region20: #{tpu_custom_call.1} parent=11 // pred_fallthru
          _
      $region12: #{tpu_custom_call.1} parent=5 // pred_fallthru
        _
      %p157 = scmp.lt.s32.totalorder %s16, 2
      // Predicated region
      $region21: #{tpu_custom_call.1} parent=5 // pred_check
        %p158 = pneg %p157
      $region22: #{tpu_custom_call.1} parent=5 // pred_check_branch
        %160 = sbr.rel (%p158) target = $region24
      $region23: #{tpu_custom_call.1} parent=5 // pred_region
        // Predicated region
        $region25: #{tpu_custom_call.1} parent=23 // pred_check
          %p161 = pneg %p50
        $region26: #{tpu_custom_call.1} parent=23 // pred_check_branch
          %163 = sbr.rel (%p161) target = $region28
        $region27: #{tpu_custom_call.1} parent=23 // pred_region
          %s164 = sand.u32 %s40, 1
          %s165 = scalar_lea.sflag [#allocation3], %s164
          %s166 = sand.u32 %s40, 1
          %s167 = smul.addr %s166, 4
          %s168 = scalar_lea.vmem [#allocation2], %s167
          %s170 = ssub.s32 64, 64
          %171 = vsyncadd %s165, %s170
          %s172 = sadd.s32 %s24, %s23
          %s173 = smul.addr %s172, 64
          %s174 = scalar_lea.hbm %s0, %s173
          %s176 = sshll.u32 %s168, 4
          %s177 = int_to_ptr.vmem [resolvable:$true] %s176
          %179 = dma.hbm_to_vmem [thread:$0]  %s174, 64, %s177, %s165
        $region28: #{tpu_custom_call.1} parent=23 // pred_fallthru
          _
      $region24: #{tpu_custom_call.1} parent=5 // pred_fallthru
        _
      %p180 = scmp.le.s32.totalorder 1, %s16
      %p181 = scmp.lt.s32.totalorder %s16, 3
      %p182 = pnand %p180, %p181
      %p183 = pneg %p182
      // Predicated region
      $region29: #{tpu_custom_call.1} parent=5 // pred_check
        _
      $region30: #{tpu_custom_call.1} parent=5 // pred_check_branch
        %185 = sbr.rel (%p182) target = $region32
      $region31: #{tpu_custom_call.1} parent=5 // pred_region
        %s186 = ssub.s32 %s16, 1
        %s187 = sand.u32 %s43, 1
        %s188 = scalar_lea.sflag [#allocation3], %s187
        %s189 = sand.u32 %s43, 1
        %s190 = smul.addr %s189, 4
        %s191 = scalar_lea.vmem [#allocation2], %s190
        // Predicated region
        $region33: #{tpu_custom_call.1} parent=31 // pred_check
          %p192 = pneg %p56
        $region34: #{tpu_custom_call.1} parent=31 // pred_check_branch
          %194 = sbr.rel (%p192) target = $region36
        $region35: #{tpu_custom_call.1} parent=31 // pred_region
          %195 = dma.done %s188, 64
        $region36: #{tpu_custom_call.1} parent=31 // pred_fallthru
          _
        // Predicated region
        $region37: #{tpu_custom_call.1} parent=31 // pred_check
          %p196 = pneg %p77
        $region38: #{tpu_custom_call.1} parent=31 // pred_check_branch
          %198 = sbr.rel (%p196) target = $region40
        $region39: #{tpu_custom_call.1} parent=31 // pred_region
          %199 = dma.done [#allocation6], 256
        $region40: #{tpu_custom_call.1} parent=31 // pred_fallthru
          _
        %s200 = sand.u32 %s43, 1
        %s201 = scalar_lea.sflag [#allocation3], %s200
        %s202 = sand.u32 %s43, 1
        %s203 = smul.addr %s202, 4
        %s204 = scalar_lea.vmem [#allocation2], %s203
        %p205 = pneg %p56
        %p206 = pneg %p53
        %p207 = pneg %p77
        %p208 = pneg %p74
        %p209 = pneg %p98
        %p210 = pneg %p95
        %p211 = pneg %p126
        %p212 = pneg %p123
        %s213 = sand.u32 %s113, 1
        %s214 = scalar_lea.sflag [#allocation4], %s213
        %s215 = sand.u32 %s113, 1
        %s216 = smul.addr %s215, 4
        %s217 = scalar_lea.vmem [#allocation7], %s216
        %v219 = vld [vmem:[%s191] sm:$0xf]
        %v220 = vld [vmem:[#allocation5] sm:$0xf]
        %v221 = vld [vmem:[#allocation5 + $0x4] sm:$0xf]
        %v222 = vld [vmem:[#allocation5 + $0x8] sm:$0xf]
        %v223 = vld [vmem:[#allocation5 + $0xc] sm:$0xf]
        %v224 = vld [vmem:[%s2] sm:$0x1]
        %v226 = vlaneseq
        %v227 = vshrl.u32 %v226, 7
        %v228 = vsub.s32 0, %v227
        %v229 = vrot.slane %v224, %v228
        %v235 = vunpack.c.l.b16 %v220
        %v236 = vunpack.c.l.b16 %v221
        %v237 = vunpack.c.l.b16 %v222
        %v238 = vunpack.c.l.b16 %v223
        %v239 = vpack.c.b16 %v236, %v235
        %v240 = vpack.c.b16 %v238, %v237
        %vm243 = vcmask 261120
        %v245 = vsel %vm243, %v219, 0
        %247 = vmatprep.subr.bf16.mxu0 0
        %248 = vmatpush1.bf16.msra.mxu0 %v239
        %249 = vmatprep.subr.bf16.mxu0 0
        %250 = vmatpush1.bf16.msra.mxu0 %v240
        %251 = vmatprep.subr.bf16.mxu0 0
        %252 = vmatpush1.bf16.msra.mxu0 0
        %253 = vmatprep.subr.bf16.mxu0 0
        %254 = vmatpush1.bf16.msra.mxu0 0
        %255 = vmatprep.subr.bf16.mxu0 0
        %256 = vmatpush1.bf16.msra.mxu0 0
        %257 = vmatprep.subr.bf16.mxu0 0
        %258 = vmatpush1.bf16.msra.mxu0 0
        %259 = vmatprep.subr.bf16.mxu0 0
        %260 = vmatpush1.bf16.msra.mxu0 0
        %261 = vmatprep.subr.bf16.mxu0 0
        %262 = vmatpush1.bf16.msra.mxu0 0
        %263 = vmatprep.subr.bf16.mxu0 0
        %264 = vmatpush1.bf16.msra.mxu0 0
        %265 = vmatprep.subr.bf16.mxu0 0
        %266 = vmatpush1.bf16.msra.mxu0 0
        %267 = vmatprep.subr.bf16.mxu0 0
        %268 = vmatpush1.bf16.msra.mxu0 0
        %269 = vmatprep.subr.bf16.mxu0 0
        %270 = vmatpush1.bf16.msra.mxu0 0
        %271 = vmatprep.subr.bf16.mxu0 0
        %272 = vmatpush1.bf16.msra.mxu0 0
        %273 = vmatprep.subr.bf16.mxu0 0
        %274 = vmatpush1.bf16.msra.mxu0 0
        %275 = vmatprep.subr.bf16.mxu0 0
        %276 = vmatpush1.bf16.msra.mxu0 0
        %277 = vmatprep.subr.bf16.mxu0 0
        %278 = vmatpush1.bf16.msra.mxu0 0
        %279 = vmatprep.mubr.bf16.mxu0 0
        %280 = vmatmul.mubr.bf16.gmra.mrb[0].mxu0 %v245
        %v281 = vpop.f32.mrb[0].mxu0
        %v282 = vadd.f32 %v229, %v281
        %v283 = vpop.f32.mrb[0].mxu0
        %v284 = vpop.f32.mrb[0].mxu0
        %v285 = vpop.f32.mrb[0].mxu0
        %286 = vdwg.mxu0
        %v287 = vpack.c.bf16 %v282, %v282
        %vm288 = vcmask 257024
        %289 = vst.msk [vmem:[%s217] sm:$0xf] %vm288, %v287
        %s290 = sand.u32 %s113, 1
        %s291 = scalar_lea.sflag [#allocation4], %s290
        %s292 = sand.u32 %s113, 1
        %s293 = smul.addr %s292, 4
        %s294 = scalar_lea.vmem [#allocation7], %s293
        // Predicated region
        $region41: #{tpu_custom_call.1} parent=31 // pred_check
          %p295 = pneg %p123
        $region42: #{tpu_custom_call.1} parent=31 // pred_check_branch
          %297 = sbr.rel (%p295) target = $region44
        $region43: #{tpu_custom_call.1} parent=31 // pred_region
          %s299 = ssub.s32 64, 64
          %300 = vsyncadd %s291, %s299
          %s301 = sadd.s32 %s26, %s25
          %s302 = smul.addr %s301, 64
          %s303 = scalar_lea.hbm %s3, %s302
          %s305 = sshll.u32 %s294, 4
          %s306 = int_to_ptr.vmem [resolvable:$true] %s305
          %308 = dma.vmem_to_hbm [thread:$0]  %s306, 64, %s303, %s291
        $region44: #{tpu_custom_call.1} parent=31 // pred_fallthru
          _
      $region32: #{tpu_custom_call.1} parent=5 // pred_fallthru
        _
      %p309 = scmp.le.s32.totalorder 2, %s16
      // Predicated region
      $region45: #{tpu_custom_call.1} parent=5 // pred_check
        %p310 = pneg %p309
      $region46: #{tpu_custom_call.1} parent=5 // pred_check_branch
        %312 = sbr.rel (%p310) target = $region48
      $region47: #{tpu_custom_call.1} parent=5 // pred_region
        %s313 = ssub.s32 %s16, 2
        // Predicated region
        $region49: #{tpu_custom_call.1} parent=47 // pred_check
          %p314 = pneg %p129
        $region50: #{tpu_custom_call.1} parent=47 // pred_check_branch
          %316 = sbr.rel (%p314) target = $region52
        $region51: #{tpu_custom_call.1} parent=47 // pred_region
          %s317 = sand.u32 %s114, 1
          %s318 = scalar_lea.sflag [#allocation4], %s317
          %s319 = sand.u32 %s114, 1
          %s320 = smul.addr %s319, 4
          %s321 = scalar_lea.vmem [#allocation7], %s320
          %322 = dma.done %s318, 64
        $region52: #{tpu_custom_call.1} parent=47 // pred_fallthru
          _
      $region48: #{tpu_custom_call.1} parent=5 // pred_fallthru
        _
    $region6: #{tpu_custom_call.1} parent=1 // loop_footer
      %s20 = sadd.s32 1, %s16
    $region7: #{tpu_custom_call.1} parent=1 // loop_footer_branch
      %15 = sbr.rel target = $region3
    $region8: #{tpu_custom_call.1} parent=1 // loop_exit
      _
    %323 = vsyncpa [#allocation3], 1
    %s324 = scalar_lea.sflag [#allocation3], 1
    %325 = vsyncpa %s324, 1
    %326 = vsyncpa [#allocation6], 1
    %327 = vsyncpa [#allocation4], 1
    %s328 = scalar_lea.sflag [#allocation4], 1
    %329 = vsyncpa %s328, 1

</llo_original>
